<compile_context>
chip_gen: v6e
topology: v6e:2x2x1
jax: 0.10.0
libtpu: 0.0.40
codegen_flags: <defaults>
</compile_context>

<pallas_src>
import functools

import jax
import jax.numpy as jnp
from jax.experimental import pallas as pl
from jax.experimental.pallas import tpu as pltpu


_VMEM_LIMIT = 48 * 1024 * 1024  # safe on v7x (64 MiB physical), ample on v5e/v6e


# ---------------------------------------------------------------------------
# Tiling helper
# ---------------------------------------------------------------------------

def _choose_tile(dim, cap, align):
    """Largest tile <= cap that divides dim and is a multiple of `align`.

    Falls back to the full dim (always legal: full-extent blocks are exempt
    from the (8,128) divisibility rule) if no aligned divisor exists."""
    if dim <= cap:
        return dim
    t = (cap // align) * align
    while t > 0 and dim % t != 0:
        t -= align
    return t if t > 0 else dim


# ---------------------------------------------------------------------------
# Tiled linear (optionally with relu / gelu epilogue)
# ---------------------------------------------------------------------------

def _apply_activation(y, activation):
    if activation == "relu":
        return jnp.maximum(y, 0.0)
    if activation == "gelu":
        # gelu_new (tanh approximation) as used by HF OpenAIGPT
        return 0.5 * y * (1.0 + jnp.tanh(
            0.7978845608028654 * (y + 0.044715 * y * y * y)))
    return y


def _linear_fullk_kernel(x_ref, w_ref, b_ref, o_ref, *, activation):
    y = jnp.dot(x_ref[...], w_ref[...],
                preferred_element_type=jnp.float32) + b_ref[...]
    o_ref[...] = _apply_activation(y, activation).astype(o_ref.dtype)


def _linear_ktiled_kernel(x_ref, w_ref, b_ref, o_ref, acc_ref, *, activation):
    k = pl.program_id(2)

    @pl.when(k == 0)
    def _():
        acc_ref[...] = jnp.zeros_like(acc_ref)

    acc_ref[...] += jnp.dot(x_ref[...], w_ref[...],
                            preferred_element_type=jnp.float32)

    @pl.when(k == pl.num_programs(2) - 1)
    def _():
        y = acc_ref[...] + b_ref[...]
        o_ref[...] = _apply_activation(y, activation).astype(o_ref.dtype)


def linear(x, w, b, activation="none", out_dtype=jnp.bfloat16,
           tm_cap=512, tn_cap=768, tk_full_cap=3072, tk_cap=1024):
    """y = act(x @ w + b). x: (M, K) bf16, w: (K, N) bf16, b: (N,) f32."""
    M, K = x.shape
    N = w.shape[1]
    if x.dtype != jnp.bfloat16:
        x = x.astype(jnp.bfloat16)
    tm = _choose_tile(M, tm_cap, 8)
    tn = _choose_tile(N, tn_cap, 128)
    b2 = b.reshape(1, N).astype(jnp.float32)

    if K <= tk_full_cap:
        # Full-K: no reduction grid axis, no accumulator scratch.
        grid = (M // tm, N // tn)
        return pl.pallas_call(
            functools.partial(_linear_fullk_kernel, activation=activation),
            out_shape=jax.ShapeDtypeStruct((M, N), out_dtype),
            grid=grid,
            in_specs=[
                pl.BlockSpec((tm, K), lambda i, j: (i, 0)),
                pl.BlockSpec((K, tn), lambda i, j: (0, j)),
                pl.BlockSpec((1, tn), lambda i, j: (0, j)),
            ],
            out_specs=pl.BlockSpec((tm, tn), lambda i, j: (i, j)),
            compiler_params=pltpu.CompilerParams(
                dimension_semantics=("parallel", "parallel"),
                vmem_limit_bytes=_VMEM_LIMIT),
        )(x, w, b2)

    # Fallback: K-tiled reduction with f32 VMEM accumulator.
    tk = _choose_tile(K, tk_cap, 128)
    grid = (M // tm, N // tn, K // tk)
    return pl.pallas_call(
        functools.partial(_linear_ktiled_kernel, activation=activation),
        out_shape=jax.ShapeDtypeStruct((M, N), out_dtype),
        grid=grid,
        in_specs=[
            pl.BlockSpec((tm, tk), lambda i, j, k: (i, k)),
            pl.BlockSpec((tk, tn), lambda i, j, k: (k, j)),
            pl.BlockSpec((1, tn), lambda i, j, k: (0, j)),
        ],
        out_specs=pl.BlockSpec((tm, tn), lambda i, j, k: (i, j)),
        scratch_shapes=[pltpu.VMEM((tm, tn), jnp.float32)],
        compiler_params=pltpu.CompilerParams(
            dimension_semantics=("parallel", "parallel", "arbitrary"),
            vmem_limit_bytes=_VMEM_LIMIT),
    )(x, w, b2)


# ---------------------------------------------------------------------------
# Tiled linear fused with residual add + LayerNorm epilogue
# (attention output proj and MLP down-proj); bf16 in / bf16 out.
# ---------------------------------------------------------------------------

def _lin_ln_fullk_kernel(x_ref, w_ref, b_ref, r_ref, g_ref, bb_ref, o_ref, *,
                         eps):
    y = jnp.dot(x_ref[...], w_ref[...], preferred_element_type=jnp.float32)
    y = y + b_ref[...] + r_ref[...].astype(jnp.float32)
    mu = jnp.mean(y, axis=-1, keepdims=True)
    var = jnp.mean(jnp.square(y - mu), axis=-1, keepdims=True)
    y = (y - mu) * jax.lax.rsqrt(var + eps)
    o_ref[...] = (y * g_ref[...] + bb_ref[...]).astype(o_ref.dtype)


def _lin_ln_ktiled_kernel(x_ref, w_ref, b_ref, r_ref, g_ref, bb_ref, o_ref,
                          acc_ref, *, eps):
    k = pl.program_id(1)

    @pl.when(k == 0)
    def _():
        acc_ref[...] = jnp.zeros_like(acc_ref)

    acc_ref[...] += jnp.dot(x_ref[...], w_ref[...],
                            preferred_element_type=jnp.float32)

    @pl.when(k == pl.num_programs(1) - 1)
    def _():
        y = acc_ref[...] + b_ref[...] + r_ref[...].astype(jnp.float32)
        mu = jnp.mean(y, axis=-1, keepdims=True)
        var = jnp.mean(jnp.square(y - mu), axis=-1, keepdims=True)
        y = (y - mu) * jax.lax.rsqrt(var + eps)
        o_ref[...] = (y * g_ref[...] + bb_ref[...]).astype(o_ref.dtype)


def linear_add_layernorm(x, w, b, residual, gamma, beta, eps=1e-5,
                         tm_cap=512, tk_full_cap=3072, tk_cap=1024):
    """LayerNorm(residual + (x @ w + b)); full output row (N = D) per block."""
    M, K = x.shape
    N = w.shape[1]
    if x.dtype != jnp.bfloat16:
        x = x.astype(jnp.bfloat16)
    if residual.dtype != jnp.bfloat16:
        residual = residual.astype(jnp.bfloat16)
    tm = _choose_tile(M, tm_cap, 8)
    b2 = b.reshape(1, N).astype(jnp.float32)
    g2 = gamma.reshape(1, N).astype(jnp.float32)
    bb2 = beta.reshape(1, N).astype(jnp.float32)

    if K <= tk_full_cap:
        grid = (M // tm,)
        return pl.pallas_call(
            functools.partial(_lin_ln_fullk_kernel, eps=eps),
            out_shape=jax.ShapeDtypeStruct((M, N), jnp.bfloat16),
            grid=grid,
            in_specs=[
                pl.BlockSpec((tm, K), lambda i: (i, 0)),
                pl.BlockSpec((K, N), lambda i: (0, 0)),
                pl.BlockSpec((1, N), lambda i: (0, 0)),
                pl.BlockSpec((tm, N), lambda i: (i, 0)),
                pl.BlockSpec((1, N), lambda i: (0, 0)),
                pl.BlockSpec((1, N), lambda i: (0, 0)),
            ],
            out_specs=pl.BlockSpec((tm, N), lambda i: (i, 0)),
            compiler_params=pltpu.CompilerParams(
                dimension_semantics=("parallel",),
                vmem_limit_bytes=_VMEM_LIMIT),
        )(x, w, b2, residual, g2, bb2)

    tk = _choose_tile(K, tk_cap, 128)
    grid = (M // tm, K // tk)
    return pl.pallas_call(
        functools.partial(_lin_ln_ktiled_kernel, eps=eps),
        out_shape=jax.ShapeDtypeStruct((M, N), jnp.bfloat16),
        grid=grid,
        in_specs=[
            pl.BlockSpec((tm, tk), lambda i, k: (i, k)),
            pl.BlockSpec((tk, N), lambda i, k: (k, 0)),
            pl.BlockSpec((1, N), lambda i, k: (0, 0)),
            pl.BlockSpec((tm, N), lambda i, k: (i, 0)),
            pl.BlockSpec((1, N), lambda i, k: (0, 0)),
            pl.BlockSpec((1, N), lambda i, k: (0, 0)),
        ],
        out_specs=pl.BlockSpec((tm, N), lambda i, k: (i, 0)),
        scratch_shapes=[pltpu.VMEM((tm, N), jnp.float32)],
        compiler_params=pltpu.CompilerParams(
            dimension_semantics=("parallel", "arbitrary"),
            vmem_limit_bytes=_VMEM_LIMIT),
    )(x, w, b2, residual, g2, bb2)


# ---------------------------------------------------------------------------
# Multi-head attention: one batch row per grid step, all heads looped
# in-kernel.  Consumes qkv in its natural (B, S, 3D) layout (no XLA
# head-split transposes) and writes a lane-dense (1, S, D) output block.
# The causal + key-padding mask is built in-kernel from the (B, S) mask.
# ---------------------------------------------------------------------------

def _attn_kernel(qkv_ref, mask_ref, o_ref, *, n_head, d_head, scale):
    S = qkv_ref.shape[1]
    D = n_head * d_head

    row = jax.lax.broadcasted_iota(jnp.int32, (S, S), 0)
    col = jax.lax.broadcasted_iota(jnp.int32, (S, S), 1)
    key_ok = mask_ref[...] != 0                              # (1, S)
    allowed = (col <= row) & key_ok                          # (S, S)
    bias = jnp.where(allowed, 0.0, -1e9).astype(jnp.float32)

    for h in range(n_head):                                  # static unroll
        q = qkv_ref[0, :, h * d_head:(h + 1) * d_head]       # (S, Dh) bf16
        k = qkv_ref[0, :, D + h * d_head:D + (h + 1) * d_head]
        v = qkv_ref[0, :, 2 * D + h * d_head:2 * D + (h + 1) * d_head]

        s = jax.lax.dot_general(q, k, (((1,), (1,)), ((), ())),
                                preferred_element_type=jnp.float32)
        s = s * scale + bias
        s_max = jnp.max(s, axis=-1, keepdims=True)
        p = jnp.exp(s - s_max)
        p = p * pl.reciprocal(jnp.sum(p, axis=-1, keepdims=True), approx=True)

        ctx = jnp.dot(p.astype(v.dtype), v, preferred_element_type=jnp.float32)
        o_ref[0, :, h * d_head:(h + 1) * d_head] = ctx.astype(o_ref.dtype)


def multihead_attention(qkv, key_mask, n_head, scale):
    """qkv: (B, S, 3D) bf16; key_mask: (B, S) int32 -> (B, S, D) bf16."""
    B, S, threeD = qkv.shape
    D = threeD // 3
    d_head = D // n_head
    return pl.pallas_call(
        functools.partial(_attn_kernel, n_head=n_head, d_head=d_head,
                          scale=scale),
        out_shape=jax.ShapeDtypeStruct((B, S, D), jnp.bfloat16),
        grid=(B,),
        in_specs=[
            pl.BlockSpec((1, S, threeD), lambda b: (b, 0, 0)),
            pl.BlockSpec((1, S), lambda b: (b, 0)),
        ],
        out_specs=pl.BlockSpec((1, S, D), lambda b: (b, 0, 0)),
        compiler_params=pltpu.CompilerParams(
            dimension_semantics=("parallel",),
            vmem_limit_bytes=_VMEM_LIMIT),
    )(qkv, key_mask)


# ---------------------------------------------------------------------------
# Mean pooling over the sequence axis (tiled over batch rows, bf16 input)
# ---------------------------------------------------------------------------

def _mean_pool_kernel(x_ref, o_ref, *, inv_s):
    x = x_ref[...].astype(jnp.float32)
    o_ref[...] = (jnp.sum(x, axis=1) * inv_s).astype(o_ref.dtype)


def mean_pool(x, bm_cap=32):
    """x: (B, S, D) bf16 -> (B, D) f32, mean over the sequence axis."""
    B, S, D = x.shape
    # keep the per-step input block under ~8 MiB (VMEM-safe on all chips)
    bytes_per_row = S * D * x.dtype.itemsize
    cap = max(1, min(bm_cap, (8 * 1024 * 1024) // max(1, bytes_per_row)))
    bm = _choose_tile(B, cap, 1)
    return pl.pallas_call(
        functools.partial(_mean_pool_kernel, inv_s=1.0 / S),
        out_shape=jax.ShapeDtypeStruct((B, D), jnp.float32),
        grid=(B // bm,),
        in_specs=[pl.BlockSpec((bm, S, D), lambda i: (i, 0, 0))],
        out_specs=pl.BlockSpec((bm, D), lambda i: (i, 0)),
        compiler_params=pltpu.CompilerParams(
            dimension_semantics=("parallel",),
            vmem_limit_bytes=_VMEM_LIMIT),
    )(x)


# ---------------------------------------------------------------------------
# Fused regression head: relu(x@w1+b1) -> relu(@w2+b2) -> @wo+bo in one call
# ---------------------------------------------------------------------------

def _head_kernel(x_ref, w1_ref, b1_ref, w2_ref, b2_ref, wo_ref, bo_ref, o_ref):
    x = x_ref[...].astype(jnp.float32)
    h = jnp.dot(x, w1_ref[...].astype(jnp.float32),
                preferred_element_type=jnp.float32) + b1_ref[...]
    h = jnp.maximum(h, 0.0)
    h = jnp.dot(h, w2_ref[...].astype(jnp.float32),
                preferred_element_type=jnp.float32) + b2_ref[...]
    h = jnp.maximum(h, 0.0)
    y = jnp.dot(h, wo_ref[...].astype(jnp.float32),
                preferred_element_type=jnp.float32) + bo_ref[...]
    o_ref[...] = y.astype(o_ref.dtype)


def head_mlp(x, hd):
    """x: (B, Din) f32. Tiny head; one fused kernel avoids 3 lane-sparse launches."""
    B, Din = x.shape
    H1 = hd["w1"].shape[1]
    O = hd["wo"].shape[1]
    return pl.pallas_call(
        _head_kernel,
        out_shape=jax.ShapeDtypeStruct((B, O), jnp.float32),
        grid=(1,),
        in_specs=[
            pl.BlockSpec((B, Din), lambda i: (0, 0)),
            pl.BlockSpec((Din, H1), lambda i: (0, 0)),
            pl.BlockSpec((1, H1), lambda i: (0, 0)),
            pl.BlockSpec((H1, H1), lambda i: (0, 0)),
            pl.BlockSpec((1, H1), lambda i: (0, 0)),
            pl.BlockSpec((H1, O), lambda i: (0, 0)),
            pl.BlockSpec((1, O), lambda i: (0, 0)),
        ],
        out_specs=pl.BlockSpec((B, O), lambda i: (0, 0)),
        compiler_params=pltpu.CompilerParams(vmem_limit_bytes=_VMEM_LIMIT),
    )(x, hd["w1"], hd["b1"].reshape(1, H1),
      hd["w2"], hd["b2"].reshape(1, H1),
      hd["wo"], hd["bo"].reshape(1, O))


# ---------------------------------------------------------------------------
# Parameter construction (deterministic, synthetic).  GEMM weights and
# embeddings are stored in bf16 ONCE here (no per-call casts).
# ---------------------------------------------------------------------------

def init_params(key, *, vocab, n_pos, n_embd, n_head, n_layer,
                num_categorical, hidden_size, output_size):
    def nrm(k, shape, scale=0.02, dtype=jnp.float32):
        return (scale * jax.random.normal(k, shape, dtype=jnp.float32)
                ).astype(dtype)

    keys = jax.random.split(key, 4 + n_layer)
    params = {
        "tok_emb": nrm(keys[0], (vocab, n_embd), dtype=jnp.bfloat16),
        "pos_emb": nrm(keys[1], (n_pos, n_embd), dtype=jnp.bfloat16),
        "layers": [],
    }
    for li in range(n_layer):
        lk = jax.random.split(keys[2 + li], 4)
        params["layers"].append({
            "w_qkv": nrm(lk[0], (n_embd, 3 * n_embd), dtype=jnp.bfloat16),
            "b_qkv": jnp.zeros((3 * n_embd,), jnp.float32),
            "w_proj": nrm(lk[1], (n_embd, n_embd), dtype=jnp.bfloat16),
            "b_proj": jnp.zeros((n_embd,), jnp.float32),
            "ln1_g": jnp.ones((n_embd,), jnp.float32),
            "ln1_b": jnp.zeros((n_embd,), jnp.float32),
            "w_fc": nrm(lk[2], (n_embd, 4 * n_embd), dtype=jnp.bfloat16),
            "b_fc": jnp.zeros((4 * n_embd,), jnp.float32),
            "w_mlp_proj": nrm(lk[3], (4 * n_embd, n_embd), dtype=jnp.bfloat16),
            "b_mlp_proj": jnp.zeros((n_embd,), jnp.float32),
            "ln2_g": jnp.ones((n_embd,), jnp.float32),
            "ln2_b": jnp.zeros((n_embd,), jnp.float32),
        })
    hk = jax.random.split(keys[2 + n_layer], 3)
    params["head"] = {
        "w1": nrm(hk[0], (n_embd + num_categorical, hidden_size)),
        "b1": jnp.zeros((hidden_size,), jnp.float32),
        "w2": nrm(hk[1], (hidden_size, hidden_size)),
        "b2": jnp.zeros((hidden_size,), jnp.float32),
        "wo": nrm(hk[2], (hidden_size, output_size)),
        "bo": jnp.zeros((output_size,), jnp.float32),
    }
    params["n_head"] = n_head
    return params


# ---------------------------------------------------------------------------
# Forward pass
# ---------------------------------------------------------------------------

def gpt1_forward(params, input_ids, attention_mask, categorical_features):
    B, S = input_ids.shape
    D = params["tok_emb"].shape[1]
    H = params["n_head"]
    Dh = D // H
    scale = 1.0 / (Dh ** 0.5)

    # embeddings (glue: gather in plain JAX), bf16 activations end-to-end
    h = (params["tok_emb"][input_ids]
         + params["pos_emb"][jnp.arange(S)][None]).astype(jnp.bfloat16)  # (B,S,D)

    key_mask = attention_mask.astype(jnp.int32)                         # (B, S)

    h2 = h.reshape(B * S, D)
    for layer in params["layers"]:
        x2 = h2
        # --- attention block (post-LN, like OpenAIGPT) ---
        qkv = linear(x2, layer["w_qkv"], layer["b_qkv"])                 # (B*S, 3D) bf16
        qkv = qkv.reshape(B, S, 3 * D)                                   # free reshape
        ctx = multihead_attention(qkv, key_mask, H, scale)               # (B, S, D) bf16
        ctx = ctx.reshape(B * S, D)                                      # free reshape
        # output proj fused with residual add + LayerNorm -> bf16
        h1 = linear_add_layernorm(ctx, layer["w_proj"], layer["b_proj"],
                                  x2, layer["ln1_g"], layer["ln1_b"])

        # --- MLP block ---
        ff = linear(h1, layer["w_fc"], layer["b_fc"], activation="gelu")
        h2 = linear_add_layernorm(ff, layer["w_mlp_proj"], layer["b_mlp_proj"],
                                  h1, layer["ln2_g"], layer["ln2_b"])

    # mean pooling over the sequence (matches seq_output.mean(axis=1))
    pooled = mean_pool(h2.reshape(B, S, D))                              # (B, D) f32
    # dropout -> identity (eval mode)
    x = jnp.concatenate([pooled, categorical_features.astype(jnp.float32)],
                        axis=1)
    return head_mlp(x, params["head"])                                   # (B, output_size)


# ---------------------------------------------------------------------------
# Demo
# ---------------------------------------------------------------------------

if __name__ == "__main__":
    # small synthetic config (stand-in for openai-gpt: n_embd=768, n_layer=12, ...)
    VOCAB, N_POS, N_EMBD, N_HEAD, N_LAYER = 50, 16, 32, 4, 2
    NUM_CAT, HIDDEN, OUT = 4, 32, 1
    B, S = 2, 8

    root = jax.random.PRNGKey(0)
    k_params, k_ids, k_cat = jax.random.split(root, 3)

    params = init_params(
        k_params, vocab=VOCAB, n_pos=N_POS, n_embd=N_EMBD, n_head=N_HEAD,
        n_layer=N_LAYER, num_categorical=NUM_CAT,
        hidden_size=HIDDEN, output_size=OUT)

    input_ids = jax.random.randint(k_ids, (B, S), 0, VOCAB, dtype=jnp.int32)
    attention_mask = jnp.ones((B, S), dtype=jnp.int32).at[1, 6:].set(0)  # pad tail of row 1
    categorical_features = jax.random.normal(k_cat, (B, NUM_CAT), dtype=jnp.float32)

    out = gpt1_forward(params, input_ids, attention_mask, categorical_features)
    out = jax.block_until_ready(out)
    assert out.shape == (B, OUT) and bool(jnp.all(jnp.isfinite(out)))
    print("KERNEL_OK")
</pallas_src>

<mosaic_0001>
module attributes {stable_mosaic.version = 11 : i64} {
  func.func @_linear_fullk_kernel(%arg0: i32, %arg1: i32, %arg2: memref<16x32xbf16, #tpu.memory_space<vmem>>, %arg3: memref<32x96xbf16, #tpu.memory_space<vmem>>, %arg4: memref<1x96xf32, #tpu.memory_space<vmem>>, %arg5: memref<16x96xbf16, #tpu.memory_space<vmem>>) attributes {dimension_semantics = [#tpu.dimension_semantics<parallel>, #tpu.dimension_semantics<parallel>], iteration_bounds = array<i64: 1, 1>, scalar_prefetch = 0 : i64, scratch_operands = 0 : i64, tpu.core_type = #tpu.core_type<tc>, window_params = [{transform_indices = @transform_0, window_bounds = array<i64: 16, 32>}, {transform_indices = @transform_1, window_bounds = array<i64: 32, 96>}, {transform_indices = @transform_2, window_bounds = array<i64: 1, 96>}, {transform_indices = @transform_3, window_bounds = array<i64: 16, 96>}]} {
    %c0 = arith.constant 0 : index
    %c0_0 = arith.constant 0 : index
    %0 = vector.load %arg2[%c0, %c0_0] : memref<16x32xbf16, #tpu.memory_space<vmem>>, vector<16x32xbf16>
    %c0_1 = arith.constant 0 : index
    %c0_2 = arith.constant 0 : index
    %1 = vector.load %arg3[%c0_1, %c0_2] : memref<32x96xbf16, #tpu.memory_space<vmem>>, vector<32x96xbf16>
    %cst = arith.constant dense<0.000000e+00> : vector<16x96xf32>
    %2 = tpu.matmul %0, %1, %cst {dimension_numbers = #tpu.dot_dimension_numbers<[1], [0], [0], [1], [0, 0, 1, 1], [], []>} : vector<16x32xbf16>, vector<32x96xbf16>, vector<16x96xf32> -> vector<16x96xf32>
    %c0_3 = arith.constant 0 : index
    %c0_4 = arith.constant 0 : index
    %3 = vector.load %arg4[%c0_3, %c0_4] : memref<1x96xf32, #tpu.memory_space<vmem>>, vector<1x96xf32>
    %4 = vector.broadcast %3 : vector<1x96xf32> to vector<16x96xf32>
    %5 = arith.addf %2, %4 : vector<16x96xf32>
    %6 = arith.truncf %5 : vector<16x96xf32> to vector<16x96xbf16>
    %c0_5 = arith.constant 0 : index
    %c0_6 = arith.constant 0 : index
    %7 = vector.load %arg5[%c0_5, %c0_6] : memref<16x96xbf16, #tpu.memory_space<vmem>>, vector<16x96xbf16>
    tpu.vector_store %arg5[%c0_5, %c0_6], %6 {strides = array<i32>} : memref<16x96xbf16, #tpu.memory_space<vmem>>, vector<16x96xbf16>,
    return
  }
  func.func @transform_0(%arg0: i32, %arg1: i32) -> (i32, i32) {
    %c0_i32 = arith.constant 0 : i32
    %c0_i32_0 = arith.constant 0 : i32
    return %arg0, %c0_i32 : i32, i32
  }
  func.func @transform_1(%arg0: i32, %arg1: i32) -> (i32, i32) {
    %c0_i32 = arith.constant 0 : i32
    %c0_i32_0 = arith.constant 0 : i32
    return %c0_i32, %arg1 : i32, i32
  }
  func.func @transform_2(%arg0: i32, %arg1: i32) -> (i32, i32) {
    %c0_i32 = arith.constant 0 : i32
    %c0_i32_0 = arith.constant 0 : i32
    return %c0_i32, %arg1 : i32, i32
  }
  func.func @transform_3(%arg0: i32, %arg1: i32) -> (i32, i32) {
    %c0_i32 = arith.constant 0 : i32
    return %arg0, %arg1 : i32, i32
  }
}

</mosaic_0001>

<llo_original>
// kernel: tpu_custom_call.1
$region0: #{tpu_custom_call.1}
  #allocation0 [shape = 'u32[]', space=smem, size = 0x4, offset = 0x4, fixed_abs, tag = 'smem constant byte address 0x4 - core index']
  #allocation1 [shape = 'u32[144,128]{1,0:T(1,128)}', space=vmem, size = 0x12000, scoped, tag = 'internal scratch']
  %s0 = inlined_call_operand.hbm [shape: bf16[16,32], index: 0, kind: input, shape index: {}]
  %s1 = inlined_call_operand.hbm [shape: bf16[32,96], index: 1, kind: input, shape index: {}]
  %s2 = inlined_call_operand.vmem [shape: f32[1,96], index: 2, kind: input, shape index: {}]
  %s3 = inlined_call_operand.hbm [shape: bf16[16,96], index: 3, kind: output, shape index: {}]
  %s4 = sld [smem:[#allocation0]]
  $region30: #{tpu_custom_call.1} parent=0
    _
  %s6 = ssub.s32 1, %s4
  %s7 = scalar_select 0, %s6, %s4
  $region1: #{tpu_custom_call.1} parent=0
    #allocation2 [shape = 'u8[4096]{0}', space=vmem, size = 0x1000, scoped, tag = 'input window, operand 0, single buffered']
    #allocation3 [shape = 's32[1]{0}', space=sflag, size = 0x4, scoped, tag = 'scoped memory for tpu_custom_call.1']
    #allocation4 [shape = 's32[1]{0}', space=sflag, size = 0x4, scoped, tag = 'scoped memory for tpu_custom_call.1']
    #allocation5 [shape = 'u8[8192]{0}', space=vmem, size = 0x2000, scoped, tag = 'input window, operand 1, single buffered']
    #allocation6 [shape = 's32[1]{0}', space=sflag, size = 0x4, scoped, tag = 'scoped memory for tpu_custom_call.1']
    #allocation7 [shape = 'u8[4096]{0}', space=vmem, size = 0x1000, scoped, tag = 'output window, operand 0, single buffered']
    %8 = vsyncpa [#allocation3], 0
    %9 = vsyncpa [#allocation6], 0
    %10 = vsyncpa [#allocation4], 0
    // Predicated region
    $region2: #{tpu_custom_call.1} parent=1 // pred_check
      _
    $region3: #{tpu_custom_call.1} parent=1 // pred_check_branch
      %12 = sbr.rel (0) target = $region5
    $region4: #{tpu_custom_call.1} parent=1 // pred_region
      %s14 = ssub.s32 128, 128
      %15 = vsyncadd [#allocation3], %s14
      %s16 = sshll.u32 [#allocation2], 4
      %s17 = int_to_ptr.vmem [resolvable:$true] %s16
      %22 = dma.hbm_to_vmem [thread:$0]  %s0, 128, %s17, [#allocation3], 64, 64, 4
    $region5: #{tpu_custom_call.1} parent=1 // pred_fallthru
      _
    // Predicated region
    $region6: #{tpu_custom_call.1} parent=1 // pred_check
      _
    $region7: #{tpu_custom_call.1} parent=1 // pred_check_branch
      %24 = sbr.rel (0) target = $region9
    $region8: #{tpu_custom_call.1} parent=1 // pred_region
      %s26 = ssub.s32 256, 256
      %27 = vsyncadd [#allocation6], %s26
      %s28 = sshll.u32 [#allocation5], 4
      %s29 = int_to_ptr.vmem [resolvable:$true] %s28
      %34 = dma.hbm_to_vmem [thread:$0]  %s1, 256, %s29, [#allocation6], 64, 64, 4
    $region9: #{tpu_custom_call.1} parent=1 // pred_fallthru
      _
    // Predicated region
    $region10: #{tpu_custom_call.1} parent=1 // pred_check
      _
    $region11: #{tpu_custom_call.1} parent=1 // pred_check_branch
      %36 = sbr.rel (0) target = $region13
    $region12: #{tpu_custom_call.1} parent=1 // pred_region
      _
    $region13: #{tpu_custom_call.1} parent=1 // pred_fallthru
      _
    // Predicated region
    $region14: #{tpu_custom_call.1} parent=1 // pred_check
      _
    $region15: #{tpu_custom_call.1} parent=1 // pred_check_branch
      %38 = sbr.rel (0) target = $region17
    $region16: #{tpu_custom_call.1} parent=1 // pred_region
      %39 = dma.done [#allocation3], 128
    $region17: #{tpu_custom_call.1} parent=1 // pred_fallthru
      _
    // Predicated region
    $region18: #{tpu_custom_call.1} parent=1 // pred_check
      _
    $region19: #{tpu_custom_call.1} parent=1 // pred_check_branch
      %41 = sbr.rel (0) target = $region21
    $region20: #{tpu_custom_call.1} parent=1 // pred_region
      %42 = dma.done [#allocation6], 256
    $region21: #{tpu_custom_call.1} parent=1 // pred_fallthru
      _
    %v44 = vld [vmem:[#allocation2] sm:$0xf]
    %v45 = vld [vmem:[#allocation2 + $0x4] sm:$0xf]
    %v46 = vld [vmem:[#allocation5] sm:$0xf]
    %v47 = vld [vmem:[#allocation5 + $0x4] sm:$0xf]
    %v48 = vld [vmem:[#allocation5 + $0x8] sm:$0xf]
    %v49 = vld [vmem:[#allocation5 + $0xc] sm:$0xf]
    %v50 = vld [vmem:[%s2] sm:$0x1]
    %v52 = vlaneseq
    %v53 = vshrl.u32 %v52, 7
    %v54 = vsub.s32 0, %v53
    %v55 = vrot.slane %v50, %v54
    %v59 = vunpack.c.l.b16 %v44
    %v60 = vunpack.c.l.b16 %v45
    %v61 = vpack.c.b16 %v60, %v59
    %v66 = vunpack.c.l.b16 %v46
    %v67 = vunpack.c.l.b16 %v47
    %v68 = vunpack.c.l.b16 %v48
    %v69 = vunpack.c.l.b16 %v49
    %v70 = vpack.c.b16 %v67, %v66
    %v71 = vpack.c.b16 %v69, %v68
    %vm74 = vcmask 261120
    %v76 = vsel %vm74, %v61, 0
    %78 = vmatprep.subr.bf16.mxu0 0
    %79 = vmatpush1.bf16.msra.mxu0 0
    %80 = vmatprep.subr.bf16.mxu0 0
    %81 = vmatpush1.bf16.msra.mxu0 0
    %82 = vmatprep.subr.bf16.mxu0 0
    %83 = vmatpush1.bf16.msra.mxu0 0
    %84 = vmatprep.subr.bf16.mxu0 0
    %85 = vmatpush1.bf16.msra.mxu0 0
    %86 = vmatprep.subr.bf16.mxu0 0
    %87 = vmatpush1.bf16.msra.mxu0 0
    %88 = vmatprep.subr.bf16.mxu0 0
    %89 = vmatpush1.bf16.msra.mxu0 0
    %90 = vmatprep.subr.bf16.mxu0 0
    %91 = vmatpush1.bf16.msra.mxu0 %v71
    %92 = vmatprep.subr.bf16.mxu0 0
    %93 = vmatpush1.bf16.msra.mxu0 %v70
    %94 = vmatprep.subr.bf16.mxu0 0
    %95 = vmatpush2.bf16.msra.mxu0 0
    %96 = vmatprep.subr.bf16.mxu0 0
    %97 = vmatpush2.bf16.msra.mxu0 0
    %98 = vmatprep.subr.bf16.mxu0 0
    %99 = vmatpush2.bf16.msra.mxu0 0
    %100 = vmatprep.subr.bf16.mxu0 0
    %101 = vmatpush2.bf16.msra.mxu0 0
    %102 = vmatprep.subr.bf16.mxu0 0
    %103 = vmatpush2.bf16.msra.mxu0 0
    %104 = vmatprep.subr.bf16.mxu0 0
    %105 = vmatpush2.bf16.msra.mxu0 0
    %106 = vmatprep.subr.bf16.mxu0 0
    %107 = vmatpush2.bf16.msra.mxu0 0
    %108 = vmatprep.subr.bf16.mxu0 0
    %109 = vmatpush2.bf16.msra.mxu0 0
    %110 = vmatprep.mubr.bf16.mxu0 0
    %111 = vmatmul.mubr.bf16.gmra.mxu0 %v76
    %v112 = vpop.f32.mrf.mxu0
    %v113 = vadd.f32 %v55, %v112
    %v114 = vpop.f32.mrf.mxu0
    %v115 = vpop.f32.mrf.mxu0
    %v116 = vadd.f32 %v55, %v115
    %v117 = vpop.f32.mrf.mxu0
    %118 = vdwg.mxu0
    %v119 = vpack.c.bf16 %v116, %v113
    %v121 = vunpack.c.l.b16 %v119
    %v122 = vunpack.c.h.b16 %v119
    %v123 = vpack.c.b16 %v121, %v121
    %v124 = vpack.c.b16 %v122, %v122
    %vm127 = vcmask 781312
    %128 = vst.msk [vmem:[#allocation7] sm:$0xf] %vm127, %v123
    %129 = vst.msk [vmem:[#allocation7 + $0x4] sm:$0xf] %vm127, %v124
    // Predicated region
    $region22: #{tpu_custom_call.1} parent=1 // pred_check
      _
    $region23: #{tpu_custom_call.1} parent=1 // pred_check_branch
      %131 = sbr.rel (0) target = $region25
    $region24: #{tpu_custom_call.1} parent=1 // pred_region
      %s133 = ssub.s32 128, 128
      %134 = vsyncadd [#allocation4], %s133
      %s135 = sshll.u32 [#allocation7], 4
      %s136 = int_to_ptr.vmem [resolvable:$true] %s135
      %141 = dma.vmem_to_hbm [thread:$0]  %s136, 128, %s3, [#allocation4], 64, 64, 4
    $region25: #{tpu_custom_call.1} parent=1 // pred_fallthru
      _
    // Predicated region
    $region26: #{tpu_custom_call.1} parent=1 // pred_check
      _
    $region27: #{tpu_custom_call.1} parent=1 // pred_check_branch
      %143 = sbr.rel (0) target = $region29
    $region28: #{tpu_custom_call.1} parent=1 // pred_region
      %144 = dma.done [#allocation4], 128
    $region29: #{tpu_custom_call.1} parent=1 // pred_fallthru
      _
    %145 = vsyncpa [#allocation3], 1
    %146 = vsyncpa [#allocation6], 1
    %147 = vsyncpa [#allocation4], 1

</llo_original>
